<compile_context>
chip_gen: v7x
topology: tpu7x:2x2x1
jax: 0.10.0
libtpu: 0.0.40
codegen_flags: <defaults>
</compile_context>

<pallas_src>
import functools
import math

import jax
import jax.numpy as jnp
from jax.experimental import pallas as pl
from jax.experimental.pallas import tpu as pltpu


def _round_up(x, m):
    return ((x + m - 1) // m) * m


def _ffnn_kernel(x_ref, w1_ref, b1_ref, w2_ref, b2_ref, o_ref, acc_ref):
    # x_ref:  (tm, E_pad)   row tile, resident across the H axis
    # w1_ref: (E_pad, th)   linear1 weight chunk (pre-transposed)
    # b1_ref: (1, th)
    # w2_ref: (th, E_pad)   linear2 weight chunk (pre-transposed)
    # b2_ref: (1, E_pad)
    # o_ref:  (tm, E_pad)
    # acc_ref:(tm, E_pad)   f32 accumulator across H chunks
    h_idx = pl.program_id(1)

    @pl.when(h_idx == 0)
    def _():
        acc_ref[...] = jnp.zeros_like(acc_ref)

    # (tm, E) @ (E, th) on the MXU, f32 accumulate; bias + ReLU in f32.
    # The cast is a no-op unless bf16 MXU operands were requested via
    # prepare_params(param_dtype=jnp.bfloat16).
    x = x_ref[...].astype(w1_ref.dtype)
    h = jnp.dot(x, w1_ref[...], preferred_element_type=jnp.float32)
    h = jnp.maximum(h + b1_ref[...].astype(jnp.float32), 0.0)
    # Dropout(p=0.1) in eval mode: identity.
    acc_ref[...] += jnp.dot(h.astype(w2_ref.dtype), w2_ref[...],
                            preferred_element_type=jnp.float32)

    @pl.when(h_idx == pl.num_programs(1) - 1)
    def _():
        o_ref[...] = (acc_ref[...]
                      + b2_ref[...].astype(jnp.float32)).astype(o_ref.dtype)


def prepare_params(w1, b1, w2, b2, *, th=512, param_dtype=None):
    """One-time layout transform (transpose + pad) of PyTorch-layout params.

    w1: (H, E) -> (E_pad, H_pad);  w2: (E, H) -> (H_pad, E_pad)
    b1: (H,)   -> (1, H_pad);      b2: (E,)   -> (1, E_pad)

    H is padded to a multiple of the desired hidden chunk `th` (so the kernel
    never has to fall back to a tiny chunk).  Zero padding keeps the math
    exactly equal to the unpadded FFN (ReLU(0 + 0) = 0 contributes nothing).
    `param_dtype=jnp.bfloat16` additionally casts the params once so the MXU
    runs bf16 matmuls (precision change — opt-in only).
    """
    H, E = w1.shape
    E_pad = _round_up(E, 128)
    # Bump to a 256 multiple for full MXU tile occupancy on v6e/v7x when the
    # extra 128 lanes are cheap (<= 12.5% overhead).
    if E_pad % 256 != 0 and E_pad >= 1024:
        E_pad += 128
    th = _round_up(min(th, _round_up(H, 128)), 128)
    H_pad = _round_up(H, th)

    if param_dtype is not None:
        w1, b1, w2, b2 = (a.astype(param_dtype) for a in (w1, b1, w2, b2))

    w1_t = jnp.zeros((E_pad, H_pad), w1.dtype).at[:E, :H].set(w1.T)
    w2_t = jnp.zeros((H_pad, E_pad), w2.dtype).at[:H, :E].set(w2.T)
    b1_p = jnp.zeros((1, H_pad), b1.dtype).at[0, :H].set(b1)
    b2_p = jnp.zeros((1, E_pad), b2.dtype).at[0, :E].set(b2)
    return w1_t, b1_p, w2_t, b2_p


def _vmem_capacity_bytes():
    try:
        return int(pltpu.get_tpu_info().vmem_capacity_bytes)
    except Exception:
        return 64 * 1024 * 1024   # conservative fallback (v7x per-core VMEM)


def _row_tiling(M, tm_target):
    """Pick (num_tiles, tm, M_pad) with <8 rows of padding per tile."""
    tm_target = max(8, min(_round_up(tm_target, 8), _round_up(M, 8)))
    n = max(1, -(-M // tm_target))
    # Guarantee >= 2 row tiles for medium/large M so both v7x TensorCores get
    # work along the "parallel" grid axis (harmless on 1-TC chips).
    if n == 1 and M >= 512:
        n = 2
    tm = _round_up(-(-M // n), 8)
    return n, tm, n * tm


@functools.partial(jax.jit, static_argnames=("tm", "th"))
def ffnn_forward(x, w1_t, b1, w2_t, b2, *, tm=None, th=512):
    """x: (B, S, E); params from prepare_params()."""
    B, S, E = x.shape
    E_pad, H_pad = w1_t.shape
    M = B * S

    bpe = jnp.dtype(x.dtype).itemsize
    wpe = jnp.dtype(w1_t.dtype).itemsize

    # Row-tile target: arithmetic intensity ~ tm FLOPs per streamed weight
    # byte, so bf16 operands can afford (and want) a bigger tile.
    if tm is None:
        tm = 1024 if wpe <= 2 else 512

    vmem_cap = _vmem_capacity_bytes()
    budget = vmem_cap * 3 // 4        # headroom for Mosaic internal scratch

    def tile_bytes(tm_act, th_act):
        # double-buffered inputs + double-buffered output + f32 accumulator
        inp = (tm_act * E_pad * bpe
               + (2 * E_pad * th_act + th_act + E_pad) * wpe)
        return 2 * inp + 2 * tm_act * E_pad * bpe + tm_act * E_pad * 4

    # Hidden-chunk candidates: divisors of H_pad that are multiples of 128
    # (prepare_params guarantees the requested th itself qualifies).
    th_start = min(_round_up(th, 128), H_pad)
    th_cands = [t for t in range(th_start, 127, -128) if H_pad % t == 0] or [128]
    tm_cands = []
    t = tm
    while t >= 64:
        tm_cands.append(t)
        t //= 2

    # Prefer the largest row tile (weight-streaming intensity), then the
    # largest hidden chunk, that fits the VMEM budget.
    chosen = None
    for tmc in tm_cands:
        n_tiles, tm_act, M_pad = _row_tiling(M, tmc)
        for thc in th_cands:
            if tile_bytes(tm_act, thc) <= budget:
                chosen = (n_tiles, tm_act, M_pad, thc)
                break
        if chosen is not None:
            break
    if chosen is None:                # smallest tiles; limit below still covers them
        n_tiles, tm_act, M_pad = _row_tiling(M, tm_cands[-1])
        chosen = (n_tiles, tm_act, M_pad, th_cands[-1])
    n_tiles, tm_act, M_pad, th_act = chosen

    # The limit handed to Mosaic is always >= the per-step footprint and never
    # exceeds physical VMEM (uses the full 128 MiB on v5e/v6e, 64 MiB on v7x).
    tb = tile_bytes(tm_act, th_act)
    vmem_limit = int(min(max(32 * 1024 * 1024, tb * 9 // 8), vmem_cap))

    # Only materialize a padded copy of x when actually needed.
    x2d = x.reshape(M, E)
    if M_pad != M or E_pad != E:
        x2d = jnp.zeros((M_pad, E_pad), x.dtype).at[:M, :E].set(x2d)

    # Advisory cost estimate with truthful HBM traffic: weights are
    # re-streamed once per row tile.
    cost = pl.CostEstimate(
        flops=4 * M_pad * E_pad * H_pad,
        transcendentals=0,
        bytes_accessed=int(
            2 * M_pad * E_pad * bpe
            + n_tiles * (w1_t.size + w2_t.size + b1.size + b2.size) * wpe),
    )

    out2d = pl.pallas_call(
        _ffnn_kernel,
        out_shape=jax.ShapeDtypeStruct((M_pad, E_pad), x.dtype),
        grid_spec=pltpu.PrefetchScalarGridSpec(
            num_scalar_prefetch=0,
            grid=(n_tiles, H_pad // th_act),
            in_specs=[
                pl.BlockSpec((tm_act, E_pad), lambda i, h: (i, 0)),   # x rows (resident over h)
                pl.BlockSpec((E_pad, th_act), lambda i, h: (0, h)),   # w1^T chunk
                pl.BlockSpec((1, th_act),     lambda i, h: (0, h)),   # b1 chunk
                pl.BlockSpec((th_act, E_pad), lambda i, h: (h, 0)),   # w2^T chunk
                pl.BlockSpec((1, E_pad),      lambda i, h: (0, 0)),   # b2 (resident)
            ],
            out_specs=pl.BlockSpec((tm_act, E_pad), lambda i, h: (i, 0)),
            scratch_shapes=[pltpu.VMEM((tm_act, E_pad), jnp.float32)],
        ),
        compiler_params=pltpu.CompilerParams(
            dimension_semantics=("parallel", "arbitrary"),
            vmem_limit_bytes=vmem_limit,
        ),
        cost_estimate=cost,
    )(x2d, w1_t, b1, w2_t, b2)

    return out2d[:M, :E].reshape(B, S, E)


def init_params(key, embedding_dim, hidden_dim, dtype=jnp.float32):
    """Deterministic init mimicking nn.Linear defaults (uniform +-1/sqrt(fan_in))."""
    k1, k2, k3, k4 = jax.random.split(key, 4)
    bound1 = 1.0 / math.sqrt(embedding_dim)
    bound2 = 1.0 / math.sqrt(hidden_dim)
    w1 = jax.random.uniform(k1, (hidden_dim, embedding_dim), dtype, -bound1, bound1)
    b1 = jax.random.uniform(k2, (hidden_dim,), dtype, -bound1, bound1)
    w2 = jax.random.uniform(k3, (embedding_dim, hidden_dim), dtype, -bound2, bound2)
    b2 = jax.random.uniform(k4, (embedding_dim,), dtype, -bound2, bound2)
    return w1, b1, w2, b2


if __name__ == "__main__":
    key = jax.random.PRNGKey(0)
    B, S, E, H = 2, 8, 32, 64           # batch, seq, embedding_dim, hidden_dim

    kx, kp = jax.random.split(key)
    x = jax.random.normal(kx, (B, S, E), dtype=jnp.float32)
    w1, b1, w2, b2 = init_params(kp, E, H)

    # One-time transpose + pad. (For the bf16 MXU fast path, pass
    # param_dtype=jnp.bfloat16 here; kept f32 to preserve module semantics.)
    params = prepare_params(w1, b1, w2, b2)
    out = ffnn_forward(x, *params)
    jax.block_until_ready(out)

    # Reference check in plain JAX (same math, eval-mode dropout = identity).
    ref = jnp.maximum(x @ w1.T + b1, 0.0) @ w2.T + b2
    assert out.shape == (B, S, E)
    assert jnp.allclose(out, ref, atol=1e-5, rtol=1e-5)

    print("KERNEL_OK")
</pallas_src>

<mosaic_0001>
module attributes {stable_mosaic.version = 11 : i64} {
  func.func @_ffnn_kernel(%arg0: i32, %arg1: i32, %arg2: memref<16x128xf32, #tpu.memory_space<vmem>>, %arg3: memref<128x128xf32, #tpu.memory_space<vmem>>, %arg4: memref<1x128xf32, #tpu.memory_space<vmem>>, %arg5: memref<128x128xf32, #tpu.memory_space<vmem>>, %arg6: memref<1x128xf32, #tpu.memory_space<vmem>>, %arg7: memref<16x128xf32, #tpu.memory_space<vmem>>, %arg8: memref<16x128xf32, #tpu.memory_space<vmem>>) attributes {dimension_semantics = [#tpu.dimension_semantics<parallel>, #tpu.dimension_semantics<arbitrary>], iteration_bounds = array<i64: 1, 1>, scalar_prefetch = 0 : i64, scratch_operands = 1 : i64, tpu.core_type = #tpu.core_type<tc>, window_params = [{transform_indices = @transform_0, window_bounds = array<i64: 16, 128>}, {transform_indices = @transform_1, window_bounds = array<i64: 128, 128>}, {transform_indices = @transform_2, window_bounds = array<i64: 1, 128>}, {transform_indices = @transform_3, window_bounds = array<i64: 128, 128>}, {pipeline_mode = #tpu.pipeline_mode<synchronous>, transform_indices = @transform_4, window_bounds = array<i64: 1, 128>}, {transform_indices = @transform_5, window_bounds = array<i64: 16, 128>}]} {
    %c0_i32 = arith.constant 0 : i32
    %0 = arith.cmpi eq, %arg1, %c0_i32 : i32
    %1 = arith.extui %0 : i1 to i32
    %c0_i32_0 = arith.constant 0 : i32
    %2 = arith.cmpi ne, %1, %c0_i32_0 : i32
    scf.if %2 {
      %cst_16 = arith.constant 0.000000e+00 : f32
      %19 = vector.broadcast %cst_16 : f32 to vector<16x128xf32>
      %c0_17 = arith.constant 0 : index
      %c0_18 = arith.constant 0 : index
      %20 = vector.load %arg8[%c0_17, %c0_18] : memref<16x128xf32, #tpu.memory_space<vmem>>, vector<16x128xf32>
      tpu.vector_store %arg8[%c0_17, %c0_18], %19 {strides = array<i32>} : memref<16x128xf32, #tpu.memory_space<vmem>>, vector<16x128xf32>,
    } else {
    }
    %c0 = arith.constant 0 : index
    %c0_1 = arith.constant 0 : index
    %3 = vector.load %arg2[%c0, %c0_1] : memref<16x128xf32, #tpu.memory_space<vmem>>, vector<16x128xf32>
    %c0_2 = arith.constant 0 : index
    %c0_3 = arith.constant 0 : index
    %4 = vector.load %arg3[%c0_2, %c0_3] : memref<128x128xf32, #tpu.memory_space<vmem>>, vector<128x128xf32>
    %cst = arith.constant dense<0.000000e+00> : vector<16x128xf32>
    %5 = tpu.matmul %3, %4, %cst {dimension_numbers = #tpu.dot_dimension_numbers<[1], [0], [0], [1], [0, 0, 1, 1], [], []>} : vector<16x128xf32>, vector<128x128xf32>, vector<16x128xf32> -> vector<16x128xf32>
    %c0_4 = arith.constant 0 : index
    %c0_5 = arith.constant 0 : index
    %6 = vector.load %arg4[%c0_4, %c0_5] : memref<1x128xf32, #tpu.memory_space<vmem>>, vector<1x128xf32>
    %7 = vector.broadcast %6 : vector<1x128xf32> to vector<16x128xf32>
    %8 = arith.addf %5, %7 : vector<16x128xf32>
    %cst_6 = arith.constant 0.000000e+00 : f32
    %9 = vector.broadcast %cst_6 : f32 to vector<16x128xf32>
    %10 = arith.maximumf %8, %9 : vector<16x128xf32>
    %c0_7 = arith.constant 0 : index
    %c0_8 = arith.constant 0 : index
    %11 = vector.load %arg8[%c0_7, %c0_8] : memref<16x128xf32, #tpu.memory_space<vmem>>, vector<16x128xf32>
    %c0_9 = arith.constant 0 : index
    %c0_10 = arith.constant 0 : index
    %12 = vector.load %arg5[%c0_9, %c0_10] : memref<128x128xf32, #tpu.memory_space<vmem>>, vector<128x128xf32>
    %cst_11 = arith.constant dense<0.000000e+00> : vector<16x128xf32>
    %13 = tpu.matmul %10, %12, %cst_11 {dimension_numbers = #tpu.dot_dimension_numbers<[1], [0], [0], [1], [0, 0, 1, 1], [], []>} : vector<16x128xf32>, vector<128x128xf32>, vector<16x128xf32> -> vector<16x128xf32>
    %14 = arith.addf %11, %13 : vector<16x128xf32>
    %c0_12 = arith.constant 0 : index
    %c0_13 = arith.constant 0 : index
    %15 = vector.load %arg8[%c0_12, %c0_13] : memref<16x128xf32, #tpu.memory_space<vmem>>, vector<16x128xf32>
    tpu.vector_store %arg8[%c0_12, %c0_13], %14 {strides = array<i32>} : memref<16x128xf32, #tpu.memory_space<vmem>>, vector<16x128xf32>,
    %c0_i32_14 = arith.constant 0 : i32
    %16 = arith.cmpi eq, %arg1, %c0_i32_14 : i32
    %17 = arith.extui %16 : i1 to i32
    %c0_i32_15 = arith.constant 0 : i32
    %18 = arith.cmpi ne, %17, %c0_i32_15 : i32
    scf.if %18 {
      %c0_16 = arith.constant 0 : index
      %c0_17 = arith.constant 0 : index
      %19 = vector.load %arg8[%c0_16, %c0_17] : memref<16x128xf32, #tpu.memory_space<vmem>>, vector<16x128xf32>
      %c0_18 = arith.constant 0 : index
      %c0_19 = arith.constant 0 : index
      %20 = vector.load %arg6[%c0_18, %c0_19] : memref<1x128xf32, #tpu.memory_space<vmem>>, vector<1x128xf32>
      %21 = vector.broadcast %20 : vector<1x128xf32> to vector<16x128xf32>
      %22 = arith.addf %19, %21 : vector<16x128xf32>
      %c0_20 = arith.constant 0 : index
      %c0_21 = arith.constant 0 : index
      %23 = vector.load %arg7[%c0_20, %c0_21] : memref<16x128xf32, #tpu.memory_space<vmem>>, vector<16x128xf32>
      tpu.vector_store %arg7[%c0_20, %c0_21], %22 {strides = array<i32>} : memref<16x128xf32, #tpu.memory_space<vmem>>, vector<16x128xf32>,
    } else {
    }
    return
  }
  func.func @transform_0(%arg0: i32, %arg1: i32) -> (i32, i32) {
    %c0_i32 = arith.constant 0 : i32
    %c0_i32_0 = arith.constant 0 : i32
    return %arg0, %c0_i32 : i32, i32
  }
  func.func @transform_1(%arg0: i32, %arg1: i32) -> (i32, i32) {
    %c0_i32 = arith.constant 0 : i32
    %c0_i32_0 = arith.constant 0 : i32
    return %c0_i32, %arg1 : i32, i32
  }
  func.func @transform_2(%arg0: i32, %arg1: i32) -> (i32, i32) {
    %c0_i32 = arith.constant 0 : i32
    %c0_i32_0 = arith.constant 0 : i32
    return %c0_i32, %arg1 : i32, i32
  }
  func.func @transform_3(%arg0: i32, %arg1: i32) -> (i32, i32) {
    %c0_i32 = arith.constant 0 : i32
    %c0_i32_0 = arith.constant 0 : i32
    return %arg1, %c0_i32 : i32, i32
  }
  func.func @transform_4(%arg0: i32, %arg1: i32) -> (i32, i32) {
    %c0_i32 = arith.constant 0 : i32
    %c0_i32_0 = arith.constant 0 : i32
    %c0_i32_1 = arith.constant 0 : i32
    return %c0_i32, %c0_i32_0 : i32, i32
  }
  func.func @transform_5(%arg0: i32, %arg1: i32) -> (i32, i32) {
    %c0_i32 = arith.constant 0 : i32
    %c0_i32_0 = arith.constant 0 : i32
    return %arg0, %c0_i32 : i32, i32
  }
}

</mosaic_0001>

<llo_original>
// kernel: ffnn_forward.1
$region0: #{ffnn_forward.1}
  #allocation0 [shape = 'u32[]', space=smem, size = 0x4, offset = 0x4, fixed_abs, tag = 'smem constant byte address 0x4 - core index']
  #allocation1 [shape = 'u32[144,128]{1,0:T(1,128)}', space=vmem, size = 0x12000, scoped, tag = 'internal scratch']
  #allocation2 [shape = 'f32[16,128]{1,0:T(8,128)}', space=vmem, size = 0x2000, scoped, tag = 'scratch operand']
  %s0 = inlined_call_operand.vmem [shape: f32[16,128], index: 0, kind: input, shape index: {}]
  %s1 = inlined_call_operand.hbm [shape: f32[128,128], index: 1, kind: input, shape index: {}]
  %s2 = inlined_call_operand.vmem [shape: f32[1,128], index: 2, kind: input, shape index: {}]
  %s3 = inlined_call_operand.hbm [shape: f32[128,128], index: 3, kind: input, shape index: {}]
  %s4 = inlined_call_operand.vmem [shape: f32[1,128], index: 4, kind: input, shape index: {}]
  %s5 = inlined_call_operand.vmem [shape: f32[16,128], index: 5, kind: output, shape index: {}]
  %s6 = sld [smem:[#allocation0]]
  $region46: #{ffnn_forward.1} parent=0
    _
  %s8 = ssub.s32 1, %s6
  %s9 = scalar_select 0, %s8, %s6
  $region1: #{ffnn_forward.1} parent=0
    #allocation3 [shape = 'u8[65536]{0}', space=vmem, size = 0x10000, scoped, tag = 'input window, operand 1, single buffered']
    #allocation4 [shape = 's32[1]{0}', space=sflag, size = 0x4, scoped, tag = 'scoped memory for ffnn_forward.1']
    #allocation5 [shape = 'u8[65536]{0}', space=vmem, size = 0x10000, scoped, tag = 'input window, operand 3, single buffered']
    #allocation6 [shape = 's32[1]{0}', space=sflag, size = 0x4, scoped, tag = 'scoped memory for ffnn_forward.1']
    %10 = vsyncpa [#allocation4], 0
    %11 = vsyncpa [#allocation6], 0
    // Predicated region
    $region2: #{ffnn_forward.1} parent=1 // pred_check
      _
    $region3: #{ffnn_forward.1} parent=1 // pred_check_branch
      %13 = sbr.rel (0) target = $region5
    $region4: #{ffnn_forward.1} parent=1 // pred_region
      _
    $region5: #{ffnn_forward.1} parent=1 // pred_fallthru
      _
    // Predicated region
    $region6: #{ffnn_forward.1} parent=1 // pred_check
      _
    $region7: #{ffnn_forward.1} parent=1 // pred_check_branch
      %15 = sbr.rel (0) target = $region9
    $region8: #{ffnn_forward.1} parent=1 // pred_region
      %s17 = ssub.s32 2048, 2048
      %18 = vsyncadd [#allocation4], %s17
      %s19 = sshll.u32 [#allocation3], 4
      %s20 = int_to_ptr.vmem [resolvable:$true] %s19
      %25 = dma.hbm_to_vmem [thread:$0]  %s1, 2048, %s20, [#allocation4], 128, 128, 8
    $region9: #{ffnn_forward.1} parent=1 // pred_fallthru
      _
    // Predicated region
    $region10: #{ffnn_forward.1} parent=1 // pred_check
      _
    $region11: #{ffnn_forward.1} parent=1 // pred_check_branch
      %27 = sbr.rel (0) target = $region13
    $region12: #{ffnn_forward.1} parent=1 // pred_region
      _
    $region13: #{ffnn_forward.1} parent=1 // pred_fallthru
      _
    // Predicated region
    $region14: #{ffnn_forward.1} parent=1 // pred_check
      _
    $region15: #{ffnn_forward.1} parent=1 // pred_check_branch
      %29 = sbr.rel (0) target = $region17
    $region16: #{ffnn_forward.1} parent=1 // pred_region
      %s31 = ssub.s32 2048, 2048
      %32 = vsyncadd [#allocation6], %s31
      %s33 = sshll.u32 [#allocation5], 4
      %s34 = int_to_ptr.vmem [resolvable:$true] %s33
      %39 = dma.hbm_to_vmem [thread:$0]  %s3, 2048, %s34, [#allocation6], 128, 128, 8
    $region17: #{ffnn_forward.1} parent=1 // pred_fallthru
      _
    // Predicated region
    $region18: #{ffnn_forward.1} parent=1 // pred_check
      _
    $region19: #{ffnn_forward.1} parent=1 // pred_check_branch
      %41 = sbr.rel (0) target = $region21
    $region20: #{ffnn_forward.1} parent=1 // pred_region
      _
    $region21: #{ffnn_forward.1} parent=1 // pred_fallthru
      _
    // Predicated region
    $region22: #{ffnn_forward.1} parent=1 // pred_check
      _
    $region23: #{ffnn_forward.1} parent=1 // pred_check_branch
      %43 = sbr.rel (0) target = $region25
    $region24: #{ffnn_forward.1} parent=1 // pred_region
      %44 = dma.done [#allocation4], 2048
    $region25: #{ffnn_forward.1} parent=1 // pred_fallthru
      _
    // Predicated region
    $region26: #{ffnn_forward.1} parent=1 // pred_check
      _
    $region27: #{ffnn_forward.1} parent=1 // pred_check_branch
      %46 = sbr.rel (0) target = $region29
    $region28: #{ffnn_forward.1} parent=1 // pred_region
      %47 = dma.done [#allocation6], 2048
    $region29: #{ffnn_forward.1} parent=1 // pred_fallthru
      _
    %p48 = scmp.eq.s32.totalorder 0, 0
    // Predicated region
    $region30: #{ffnn_forward.1} parent=1 // pred_check
      %p49 = pneg %p48
    $region31: #{ffnn_forward.1} parent=1 // pred_check_branch
      %51 = sbr.rel (%p49) target = $region33
    $region32: #{ffnn_forward.1} parent=1 // pred_region
      %52 = vst [vmem:[#allocation2] sm:$0xff] 0.0
      %53 = vst [vmem:[#allocation2 + $0x8] sm:$0xff] 0.0
    $region33: #{ffnn_forward.1} parent=1 // pred_fallthru
      _
    %v54 = vld [vmem:[%s0] sm:$0xff]
    %v55 = vld [vmem:[%s0 + $0x8] sm:$0xff]
    %v56 = vld [vmem:[#allocation3] sm:$0xff]
    %v57 = vld [vmem:[#allocation3 + $0x8] sm:$0xff]
    %v58 = vld [vmem:[#allocation3 + $0x10] sm:$0xff]
    %v59 = vld [vmem:[#allocation3 + $0x18] sm:$0xff]
    %v60 = vld [vmem:[#allocation3 + $0x20] sm:$0xff]
    %v61 = vld [vmem:[#allocation3 + $0x28] sm:$0xff]
    %v62 = vld [vmem:[#allocation3 + $0x30] sm:$0xff]
    %v63 = vld [vmem:[#allocation3 + $0x38] sm:$0xff]
    %v64 = vld [vmem:[#allocation3 + $0x40] sm:$0xff]
    %v65 = vld [vmem:[#allocation3 + $0x48] sm:$0xff]
    %v66 = vld [vmem:[#allocation3 + $0x50] sm:$0xff]
    %v67 = vld [vmem:[#allocation3 + $0x58] sm:$0xff]
    %v68 = vld [vmem:[#allocation3 + $0x60] sm:$0xff]
    %v69 = vld [vmem:[#allocation3 + $0x68] sm:$0xff]
    %v70 = vld [vmem:[#allocation3 + $0x70] sm:$0xff]
    %v71 = vld [vmem:[#allocation3 + $0x78] sm:$0xff]
    %v72 = vld [vmem:[%s2] sm:$0x1]
    %v74 = vlaneseq
    %v75 = vshrl.u32 %v74, 7
    %v76 = vsub.s32 0, %v75
    %v77 = vrot.slane %v72, %v76
    %79 = vmatprep.subr.mxu0 0.0
    %80 = vmatpush1.msra.mxu0 %v56
    %81 = vmatprep.subr.mxu0 0.0
    %82 = vmatpush1.msra.mxu0 %v57
    %83 = vmatprep.subr.mxu0 0.0
    %84 = vmatpush1.msra.mxu0 %v58
    %85 = vmatprep.subr.mxu0 0.0
    %86 = vmatpush1.msra.mxu0 %v59
    %87 = vmatprep.subr.mxu0 0.0
    %88 = vmatpush1.msra.mxu0 %v60
    %89 = vmatprep.subr.mxu0 0.0
    %90 = vmatpush1.msra.mxu0 %v61
    %91 = vmatprep.subr.mxu0 0.0
    %92 = vmatpush1.msra.mxu0 %v62
    %93 = vmatprep.subr.mxu0 0.0
    %94 = vmatpush1.msra.mxu0 %v63
    %95 = vmatprep.subr.mxu0 0.0
    %96 = vmatpush1.msra.mxu0 %v64
    %97 = vmatprep.subr.mxu0 0.0
    %98 = vmatpush1.msra.mxu0 %v65
    %99 = vmatprep.subr.mxu0 0.0
    %100 = vmatpush1.msra.mxu0 %v66
    %101 = vmatprep.subr.mxu0 0.0
    %102 = vmatpush1.msra.mxu0 %v67
    %103 = vmatprep.subr.mxu0 0.0
    %104 = vmatpush1.msra.mxu0 %v68
    %105 = vmatprep.subr.mxu0 0.0
    %106 = vmatpush1.msra.mxu0 %v69
    %107 = vmatprep.subr.mxu0 0.0
    %108 = vmatpush1.msra.mxu0 %v70
    %109 = vmatprep.subr.mxu0 0.0
    %110 = vmatpush1.msra.mxu0 %v71
    %111 = vmatprep.subr.mxu0 0.0
    %112 = vmatpush1.msra.mxu0 0.0
    %113 = vmatprep.subr.mxu0 0.0
    %114 = vmatpush1.msra.mxu0 0.0
    %115 = vmatprep.subr.mxu0 0.0
    %116 = vmatpush1.msra.mxu0 0.0
    %117 = vmatprep.subr.mxu0 0.0
    %118 = vmatpush1.msra.mxu0 0.0
    %119 = vmatprep.subr.mxu0 0.0
    %120 = vmatpush1.msra.mxu0 0.0
    %121 = vmatprep.subr.mxu0 0.0
    %122 = vmatpush1.msra.mxu0 0.0
    %123 = vmatprep.subr.mxu0 0.0
    %124 = vmatpush1.msra.mxu0 0.0
    %125 = vmatprep.subr.mxu0 0.0
    %126 = vmatpush1.msra.mxu0 0.0
    %127 = vmatprep.subr.mxu0 0.0
    %128 = vmatpush1.msra.mxu0 0.0
    %129 = vmatprep.subr.mxu0 0.0
    %130 = vmatpush1.msra.mxu0 0.0
    %131 = vmatprep.subr.mxu0 0.0
    %132 = vmatpush1.msra.mxu0 0.0
    %133 = vmatprep.subr.mxu0 0.0
    %134 = vmatpush1.msra.mxu0 0.0
    %135 = vmatprep.subr.mxu0 0.0
    %136 = vmatpush1.msra.mxu0 0.0
    %137 = vmatprep.subr.mxu0 0.0
    %138 = vmatpush1.msra.mxu0 0.0
    %139 = vmatprep.subr.mxu0 0.0
    %140 = vmatpush1.msra.mxu0 0.0
    %141 = vmatprep.subr.mxu0 0.0
    %142 = vmatpush1.msra.mxu0 0.0
    %143 = vmatprep.mubr.f32.mxu0 0.0
    %144 = vmatmul.mubr.f32.gmra.mrb[0].mxu0 %v54
    %v145 = vpop.f32.mrb[0].mxu0
    %v146 = vadd.f32 %v77, %v145
    %v147 = vpop.f32.mrb[0].mxu0
    %148 = vmatprep.mubr.f32.mxu0 0.0
    %149 = vmatmul.mubr.f32.gmra.mrb[0].mxu0 %v55
    %v150 = vpop.f32.mrb[0].mxu0
    %v151 = vadd.f32 %v77, %v150
    %v152 = vpop.f32.mrb[0].mxu0
    %153 = vdwg.mxu0
    %v154 = vmax.f32 %v146, 0.0
    %v155 = vmax.f32 %v151, 0.0
    %v156 = vld [vmem:[#allocation2] sm:$0xff]
    %v157 = vld [vmem:[#allocation2 + $0x8] sm:$0xff]
    %v158 = vld [vmem:[#allocation5] sm:$0xff]
    %v159 = vld [vmem:[#allocation5 + $0x8] sm:$0xff]
    %v160 = vld [vmem:[#allocation5 + $0x10] sm:$0xff]
    %v161 = vld [vmem:[#allocation5 + $0x18] sm:$0xff]
    %v162 = vld [vmem:[#allocation5 + $0x20] sm:$0xff]
    %v163 = vld [vmem:[#allocation5 + $0x28] sm:$0xff]
    %v164 = vld [vmem:[#allocation5 + $0x30] sm:$0xff]
    %v165 = vld [vmem:[#allocation5 + $0x38] sm:$0xff]
    %v166 = vld [vmem:[#allocation5 + $0x40] sm:$0xff]
    %v167 = vld [vmem:[#allocation5 + $0x48] sm:$0xff]
    %v168 = vld [vmem:[#allocation5 + $0x50] sm:$0xff]
    %v169 = vld [vmem:[#allocation5 + $0x58] sm:$0xff]
    %v170 = vld [vmem:[#allocation5 + $0x60] sm:$0xff]
    %v171 = vld [vmem:[#allocation5 + $0x68] sm:$0xff]
    %v172 = vld [vmem:[#allocation5 + $0x70] sm:$0xff]
    %v173 = vld [vmem:[#allocation5 + $0x78] sm:$0xff]
    %174 = vmatprep.subr.mxu0 0.0
    %175 = vmatpush1.msra.mxu0 %v158
    %176 = vmatprep.subr.mxu0 0.0
    %177 = vmatpush1.msra.mxu0 %v159
    %178 = vmatprep.subr.mxu0 0.0
    %179 = vmatpush1.msra.mxu0 %v160
    %180 = vmatprep.subr.mxu0 0.0
    %181 = vmatpush1.msra.mxu0 %v161
    %182 = vmatprep.subr.mxu0 0.0
    %183 = vmatpush1.msra.mxu0 %v162
    %184 = vmatprep.subr.mxu0 0.0
    %185 = vmatpush1.msra.mxu0 %v163
    %186 = vmatprep.subr.mxu0 0.0
    %187 = vmatpush1.msra.mxu0 %v164
    %188 = vmatprep.subr.mxu0 0.0
    %189 = vmatpush1.msra.mxu0 %v165
    %190 = vmatprep.subr.mxu0 0.0
    %191 = vmatpush1.msra.mxu0 %v166
    %192 = vmatprep.subr.mxu0 0.0
    %193 = vmatpush1.msra.mxu0 %v167
    %194 = vmatprep.subr.mxu0 0.0
    %195 = vmatpush1.msra.mxu0 %v168
    %196 = vmatprep.subr.mxu0 0.0
    %197 = vmatpush1.msra.mxu0 %v169
    %198 = vmatprep.subr.mxu0 0.0
    %199 = vmatpush1.msra.mxu0 %v170
    %200 = vmatprep.subr.mxu0 0.0
    %201 = vmatpush1.msra.mxu0 %v171
    %202 = vmatprep.subr.mxu0 0.0
    %203 = vmatpush1.msra.mxu0 %v172
    %204 = vmatprep.subr.mxu0 0.0
    %205 = vmatpush1.msra.mxu0 %v173
    %206 = vmatprep.subr.mxu0 0.0
    %207 = vmatpush1.msra.mxu0 0.0
    %208 = vmatprep.subr.mxu0 0.0
    %209 = vmatpush1.msra.mxu0 0.0
    %210 = vmatprep.subr.mxu0 0.0
    %211 = vmatpush1.msra.mxu0 0.0
    %212 = vmatprep.subr.mxu0 0.0
    %213 = vmatpush1.msra.mxu0 0.0
    %214 = vmatprep.subr.mxu0 0.0
    %215 = vmatpush1.msra.mxu0 0.0
    %216 = vmatprep.subr.mxu0 0.0
    %217 = vmatpush1.msra.mxu0 0.0
    %218 = vmatprep.subr.mxu0 0.0
    %219 = vmatpush1.msra.mxu0 0.0
    %220 = vmatprep.subr.mxu0 0.0
    %221 = vmatpush1.msra.mxu0 0.0
    %222 = vmatprep.subr.mxu0 0.0
    %223 = vmatpush1.msra.mxu0 0.0
    %224 = vmatprep.subr.mxu0 0.0
    %225 = vmatpush1.msra.mxu0 0.0
    %226 = vmatprep.subr.mxu0 0.0
    %227 = vmatpush1.msra.mxu0 0.0
    %228 = vmatprep.subr.mxu0 0.0
    %229 = vmatpush1.msra.mxu0 0.0
    %230 = vmatprep.subr.mxu0 0.0
    %231 = vmatpush1.msra.mxu0 0.0
    %232 = vmatprep.subr.mxu0 0.0
    %233 = vmatpush1.msra.mxu0 0.0
    %234 = vmatprep.subr.mxu0 0.0
    %235 = vmatpush1.msra.mxu0 0.0
    %236 = vmatprep.subr.mxu0 0.0
    %237 = vmatpush1.msra.mxu0 0.0
    %238 = vmatprep.mubr.f32.mxu0 0.0
    %239 = vmatmul.mubr.f32.gmra.mrb[0].mxu0 %v154
    %v240 = vpop.f32.mrb[0].mxu0
    %v241 = vadd.f32 0.0, %v240
    %v242 = vpop.f32.mrb[0].mxu0
    %243 = vmatprep.mubr.f32.mxu0 0.0
    %244 = vmatmul.mubr.f32.gmra.mrb[0].mxu0 %v155
    %v245 = vpop.f32.mrb[0].mxu0
    %v246 = vadd.f32 0.0, %v245
    %v247 = vpop.f32.mrb[0].mxu0
    %248 = vdwg.mxu0
    %v249 = vadd.f32 %v156, %v241
    %v250 = vadd.f32 %v157, %v246
    %251 = vst [vmem:[#allocation2] sm:$0xff] %v249
    %252 = vst [vmem:[#allocation2 + $0x8] sm:$0xff] %v250
    // Predicated region
    $region34: #{ffnn_forward.1} parent=1 // pred_check
      %p253 = pneg %p48
    $region35: #{ffnn_forward.1} parent=1 // pred_check_branch
      %255 = sbr.rel (%p253) target = $region37
    $region36: #{ffnn_forward.1} parent=1 // pred_region
      %v256 = vld [vmem:[#allocation2] sm:$0xff]
      %v257 = vld [vmem:[#allocation2 + $0x8] sm:$0xff]
      %v258 = vld [vmem:[%s4] sm:$0x1]
      %v260 = vlaneseq
      %v261 = vshrl.u32 %v260, 7
      %v262 = vsub.s32 0, %v261
      %v263 = vrot.slane %v258, %v262
      %v265 = vadd.f32 %v256, %v263
      %v266 = vadd.f32 %v257, %v263
      %267 = vst [vmem:[%s5] sm:$0xff] %v265
      %268 = vst [vmem:[%s5 + $0x8] sm:$0xff] %v266
    $region37: #{ffnn_forward.1} parent=1 // pred_fallthru
      _
    // Predicated region
    $region38: #{ffnn_forward.1} parent=1 // pred_check
      _
    $region39: #{ffnn_forward.1} parent=1 // pred_check_branch
      %270 = sbr.rel (0) target = $region41
    $region40: #{ffnn_forward.1} parent=1 // pred_region
      _
    $region41: #{ffnn_forward.1} parent=1 // pred_fallthru
      _
    // Predicated region
    $region42: #{ffnn_forward.1} parent=1 // pred_check
      _
    $region43: #{ffnn_forward.1} parent=1 // pred_check_branch
      %272 = sbr.rel (0) target = $region45
    $region44: #{ffnn_forward.1} parent=1 // pred_region
      _
    $region45: #{ffnn_forward.1} parent=1 // pred_fallthru
      _
    %273 = vsyncpa [#allocation4], 1
    %274 = vsyncpa [#allocation6], 1

</llo_original>
